<compile_context>
chip_gen: v6e
topology: v6e:2x2x1
jax: 0.10.0
libtpu: 0.0.40
codegen_flags: <defaults>
</compile_context>

<pallas_src>
import functools

import jax
import jax.numpy as jnp
from jax.experimental import pallas as pl
from jax.experimental.pallas import tpu as pltpu

N_S = 108            # = 12 * 3 * 3 after two valid 3x3 convs on a (9, 7, 7) input
FLAT_IN = 9 * 7 * 7  # 441: flat NCHW input
K_IN = 512           # 441 padded to a lane-aligned 512
C1 = 256             # conv1 flat output 9*5*5 = 225, padded
C2 = 128             # conv2 flat output 12*3*3 = 108 (= N_S), padded
HID = 128            # pi1 / v1 hidden width

# Row/col layout of the packed (1024, 256) bf16 weight buffer.  All row offsets
# are multiples of 16 (bf16 sublane tile) and col offsets multiples of 128.
_M1_R0, _M1_R1 = 0, 512       # m1 (conv1):  (512, 256), cols 0:256
_M2_R0, _M2_R1 = 512, 768     # m2 (conv2):  (256, 128), cols 0:128
_WO_R0, _WO_R1 = 512, 768     # wo (pi2||v2):(256, 128), cols 128:256
_WH_R0, _WH_R1 = 768, 896     # wh (pi1||v1):(128, 256), cols 0:256
_WL_R0, _WL_R1 = 896, 1024    # wl (linear): (128, 128), cols 0:128
W_ROWS = 1024


def _round_up(n, m):
    return ((n + m - 1) // m) * m


# ---------------------------------------------------------------------------
# Fused Pallas kernel: 5 lane-aligned bf16 MXU matmuls, f32 accumulation,
# all activations stay in VMEM/vregs.
# ---------------------------------------------------------------------------
def _net_kernel(x_ref, w_ref, b_ref, out_ref):
    x = x_ref[...]                                   # (bt, 512)  bf16
    # Static, tile-aligned views into the packed weight / bias buffers.
    m1 = w_ref[_M1_R0:_M1_R1, :]                     # (512, 256) bf16
    m2 = w_ref[_M2_R0:_M2_R1, 0:128]                 # (256, 128) bf16
    wo = w_ref[_WO_R0:_WO_R1, 128:256]               # (256, 128) bf16
    wh = w_ref[_WH_R0:_WH_R1, :]                     # (128, 256) bf16
    wl = w_ref[_WL_R0:_WL_R1, 0:128]                 # (128, 128) bf16
    b1 = b_ref[0:1, :]                               # (1, 256)   f32
    b2 = b_ref[1:2, 0:128]
    bl = b_ref[2:3, 0:128]
    bh = b_ref[3:4, :]
    bo = b_ref[4:5, 0:128]

    # conv1 (as matmul) + ReLU — f32 accumulate, f32 elementwise.
    h1 = jnp.maximum(
        jnp.dot(x, m1, preferred_element_type=jnp.float32) + b1, 0.0)
    # conv2 (as matmul) + ReLU (flatten is implicit: columns are NCHW order).
    h2 = jnp.maximum(
        jnp.dot(h1.astype(jnp.bfloat16), m2,
                preferred_element_type=jnp.float32) + b2, 0.0)
    # linear + tanh
    lin = jnp.tanh(
        jnp.dot(h2.astype(jnp.bfloat16), wl,
                preferred_element_type=jnp.float32) + bl)
    # TODO(synk): nn.Dropout(p=0.2) is identity at inference; stochastic
    # training-mode dropout is not implemented here.
    # fused pi1 || v1 hidden + tanh
    hv = jnp.tanh(
        jnp.dot(lin.astype(jnp.bfloat16), wh,
                preferred_element_type=jnp.float32) + bh)
    # fused pi2 || v2 output slab (lane-dense 128-wide; sliced in the wrapper).
    out_ref[...] = (
        jnp.dot(hv.astype(jnp.bfloat16), wo,
                preferred_element_type=jnp.float32) + bo)


# ---------------------------------------------------------------------------
# One-time parameter preparation (JAX glue, outside the hot path).
# ---------------------------------------------------------------------------
def _conv_matrix(w, in_shape):
    """Dense matrix M s.t. flatten(conv_valid(x, w)) == flatten(x) @ M."""
    C, H, W = in_shape
    n_in = C * H * W
    basis = jnp.eye(n_in, dtype=jnp.float32).reshape(n_in, C, H, W)
    out = jax.lax.conv_general_dilated(
        basis, w, window_strides=(1, 1), padding="VALID",
        dimension_numbers=("NCHW", "OIHW", "NCHW"))
    return out.reshape(n_in, -1)


def prepare_params(params, a_dim):
    """Fuse / transpose / zero-pad all weights once into 2 packed buffers."""
    assert a_dim + 1 <= C2, "logits+value must fit the 128-wide output slab"

    m1 = _conv_matrix(params["w_cnn1"], (9, 7, 7))   # (441, 225)
    b1 = jnp.repeat(params["b_cnn1"], 25)            # (225,)  NCHW order
    m2 = _conv_matrix(params["w_cnn2"], (9, 5, 5))   # (225, 108)
    b2 = jnp.repeat(params["b_cnn2"], 9)             # (108,)

    w = jnp.zeros((W_ROWS, 256), jnp.float32)
    # conv1 as dense matmul (padded rows/cols stay exactly zero).
    w = w.at[_M1_R0:_M1_R0 + FLAT_IN, 0:225].set(m1)
    # conv2 as dense matmul.
    w = w.at[_M2_R0:_M2_R0 + 225, 0:N_S].set(m2)
    # fused pi2 || v2 output head -> lane-dense 128-wide slab.
    w = w.at[_WO_R0:_WO_R0 + HID, 128:128 + a_dim].set(params["w_pi2"].T)
    w = w.at[_WO_R0 + HID:_WO_R0 + 2 * HID,
             128 + a_dim:128 + a_dim + 1].set(params["w_v2"].T)
    # fused pi1 || v1 hidden.
    w = w.at[_WH_R0:_WH_R0 + N_S, 0:HID].set(params["w_pi1"].T)
    w = w.at[_WH_R0:_WH_R0 + N_S, HID:2 * HID].set(params["w_v1"].T)
    # linear.
    w = w.at[_WL_R0:_WL_R0 + N_S, 0:N_S].set(params["w_lin"].T)

    b = jnp.zeros((8, 256), jnp.float32)
    b = b.at[0, 0:225].set(b1)
    b = b.at[1, 0:N_S].set(b2)
    b = b.at[2, 0:N_S].set(params["b_lin"])
    b = b.at[3, 0:HID].set(params["b_pi1"])
    b = b.at[3, HID:2 * HID].set(params["b_v1"])
    b = b.at[4, 0:a_dim].set(params["b_pi2"])
    b = b.at[4, a_dim].set(params["b_v2"][0])

    return {"w_pack": w.astype(jnp.bfloat16), "b_pack": b}


# ---------------------------------------------------------------------------
# Forward
# ---------------------------------------------------------------------------
def net_forward(prep, x, a_dim):
    """x: (B, 9, 7, 7) NCHW float32 -> (logits (B, a_dim), values (B, 1))."""
    B = x.shape[0]
    if B <= 256:
        # Single full-array block: no row padding, grid=(1,).
        bt, Bp = B, B
    else:
        # <=256 rows per tile, and at least 2 grid steps so both v7x
        # TensorCores get work under dimension_semantics=("parallel",).
        bt = min(256, _round_up(-(-B // 2), 8))
        Bp = _round_up(B, bt)

    x_flat = x.reshape(B, FLAT_IN)                       # free reshape
    # Single fused XLA op: zero-pad K (and rows if needed) + cast to bf16.
    x_p = jnp.pad(x_flat, ((0, Bp - B), (0, K_IN - FLAT_IN))).astype(jnp.bfloat16)

    flops = 2 * Bp * (K_IN * C1 + C1 * C2 + C2 * C2 + C2 * 2 * HID + 2 * HID * C2)
    cost = pl.CostEstimate(
        flops=flops,
        transcendentals=Bp * (C2 + 2 * HID),
        bytes_accessed=(W_ROWS * 256 * 2 + 8 * 256 * 4
                        + Bp * K_IN * 2 + Bp * C2 * 4),
    )

    out = pl.pallas_call(
        _net_kernel,
        out_shape=jax.ShapeDtypeStruct((Bp, C2), jnp.float32),
        grid=(Bp // bt,),
        in_specs=[
            pl.BlockSpec((bt, K_IN), lambda i: (i, 0)),
            pl.BlockSpec((W_ROWS, 256), lambda i: (0, 0)),   # VMEM-resident weights
            pl.BlockSpec((8, 256), lambda i: (0, 0)),        # VMEM-resident biases
        ],
        out_specs=pl.BlockSpec((bt, C2), lambda i: (i, 0)),
        compiler_params=pltpu.CompilerParams(
            dimension_semantics=("parallel",)),
        cost_estimate=cost,
    )(x_p, prep["w_pack"], prep["b_pack"])

    logits = out[:B, :a_dim]
    values = out[:B, a_dim:a_dim + 1]
    return logits, values


# ---------------------------------------------------------------------------
# Raw parameters (PyTorch layout: Linear weights are (out, in), conv OIHW)
# ---------------------------------------------------------------------------
def init_params(key, s_dim, a_dim):
    ks = jax.random.split(key, 7)

    def w(k, shape):
        return (0.1 * jax.random.normal(k, shape)).astype(jnp.float32)

    return {
        "w_cnn1": w(ks[0], (9, 9, 3, 3)),   "b_cnn1": jnp.zeros((9,), jnp.float32),
        "w_cnn2": w(ks[1], (12, 9, 3, 3)),  "b_cnn2": jnp.zeros((12,), jnp.float32),
        "w_lin":  w(ks[2], (s_dim, s_dim)), "b_lin":  jnp.zeros((s_dim,), jnp.float32),
        "w_pi1":  w(ks[3], (128, s_dim)),   "b_pi1":  jnp.zeros((128,), jnp.float32),
        "w_pi2":  w(ks[4], (a_dim, 128)),   "b_pi2":  jnp.zeros((a_dim,), jnp.float32),
        "w_v1":   w(ks[5], (128, s_dim)),   "b_v1":   jnp.zeros((128,), jnp.float32),
        "w_v2":   w(ks[6], (1, 128)),       "b_v2":   jnp.zeros((1,), jnp.float32),
    }


def _reference_forward(params, x):
    """Pure-JAX f32 reference matching the PyTorch module (correctness check)."""
    dn = ("NCHW", "OIHW", "NCHW")
    h1 = jax.nn.relu(
        jax.lax.conv_general_dilated(x, params["w_cnn1"], (1, 1), "VALID",
                                     dimension_numbers=dn)
        + params["b_cnn1"][None, :, None, None])
    h2 = jax.nn.relu(
        jax.lax.conv_general_dilated(h1, params["w_cnn2"], (1, 1), "VALID",
                                     dimension_numbers=dn)
        + params["b_cnn2"][None, :, None, None])
    f = h2.reshape(x.shape[0], N_S)                       # NCHW channel-major flatten
    lin = jnp.tanh(f @ params["w_lin"].T + params["b_lin"])
    pi1 = jnp.tanh(lin @ params["w_pi1"].T + params["b_pi1"])
    logits = pi1 @ params["w_pi2"].T + params["b_pi2"]
    v1 = jnp.tanh(lin @ params["w_v1"].T + params["b_v1"])
    values = v1 @ params["w_v2"].T + params["b_v2"]
    return logits, values


if __name__ == "__main__":
    key = jax.random.PRNGKey(0)
    kx, kp = jax.random.split(key)
    B, A_DIM = 2, 4
    x = jax.random.normal(kx, (B, 9, 7, 7), dtype=jnp.float32)  # NCHW like PyTorch
    params = init_params(kp, N_S, A_DIM)
    prep = prepare_params(params, A_DIM)     # one-time fuse/transpose/pad/bf16-cast

    fwd = jax.jit(functools.partial(net_forward, a_dim=A_DIM))
    logits, values = fwd(prep, x)
    jax.block_until_ready((logits, values))

    ref_logits, ref_values = _reference_forward(params, x)
    assert logits.shape == (B, A_DIM) and logits.dtype == jnp.float32
    assert values.shape == (B, 1) and values.dtype == jnp.float32
    assert bool(jnp.all(jnp.isfinite(logits))) and bool(jnp.all(jnp.isfinite(values)))
    # bf16 matmul operands -> looser tolerance vs. the f32 reference.
    assert jnp.allclose(logits, ref_logits, atol=5e-2, rtol=5e-2)
    assert jnp.allclose(values, ref_values, atol=5e-2, rtol=5e-2)
    print("KERNEL_OK")
</pallas_src>

<mosaic_0001>
module attributes {stable_mosaic.version = 11 : i64} {
  func.func @_net_kernel(%arg0: i32, %arg1: memref<2x512xbf16, #tpu.memory_space<vmem>>, %arg2: memref<1024x256xbf16, #tpu.memory_space<vmem>>, %arg3: memref<8x256xf32, #tpu.memory_space<vmem>>, %arg4: memref<2x128xf32, #tpu.memory_space<vmem>>) attributes {dimension_semantics = [#tpu.dimension_semantics<parallel>], iteration_bounds = array<i64: 1>, scalar_prefetch = 0 : i64, scratch_operands = 0 : i64, tpu.core_type = #tpu.core_type<tc>, window_params = [{transform_indices = @transform_0, window_bounds = array<i64: 2, 512>}, {pipeline_mode = #tpu.pipeline_mode<synchronous>, transform_indices = @transform_1, window_bounds = array<i64: 1024, 256>}, {pipeline_mode = #tpu.pipeline_mode<synchronous>, transform_indices = @transform_2, window_bounds = array<i64: 8, 256>}, {transform_indices = @transform_3, window_bounds = array<i64: 2, 128>}]} {
    %c0 = arith.constant 0 : index
    %c0_0 = arith.constant 0 : index
    %0 = vector.load %arg1[%c0, %c0_0] : memref<2x512xbf16, #tpu.memory_space<vmem>>, vector<2x512xbf16>
    %c0_1 = arith.constant 0 : index
    %c0_2 = arith.constant 0 : index
    %1 = vector.load %arg2[%c0_1, %c0_2] : memref<1024x256xbf16, #tpu.memory_space<vmem>>, vector<512x256xbf16>
    %c512 = arith.constant 512 : index
    %c0_3 = arith.constant 0 : index
    %2 = vector.load %arg2[%c512, %c0_3] : memref<1024x256xbf16, #tpu.memory_space<vmem>>, vector<256x128xbf16>
    %c512_4 = arith.constant 512 : index
    %c128 = arith.constant 128 : index
    %3 = vector.load %arg2[%c512_4, %c128] : memref<1024x256xbf16, #tpu.memory_space<vmem>>, vector<256x128xbf16>
    %c768 = arith.constant 768 : index
    %c0_5 = arith.constant 0 : index
    %4 = vector.load %arg2[%c768, %c0_5] : memref<1024x256xbf16, #tpu.memory_space<vmem>>, vector<128x256xbf16>
    %c896 = arith.constant 896 : index
    %c0_6 = arith.constant 0 : index
    %5 = vector.load %arg2[%c896, %c0_6] : memref<1024x256xbf16, #tpu.memory_space<vmem>>, vector<128x128xbf16>
    %c0_7 = arith.constant 0 : index
    %c0_8 = arith.constant 0 : index
    %6 = vector.load %arg3[%c0_7, %c0_8] : memref<8x256xf32, #tpu.memory_space<vmem>>, vector<1x256xf32>
    %c1 = arith.constant 1 : index
    %c0_9 = arith.constant 0 : index
    %7 = vector.load %arg3[%c1, %c0_9] : memref<8x256xf32, #tpu.memory_space<vmem>>, vector<1x128xf32>
    %c2 = arith.constant 2 : index
    %c0_10 = arith.constant 0 : index
    %8 = vector.load %arg3[%c2, %c0_10] : memref<8x256xf32, #tpu.memory_space<vmem>>, vector<1x128xf32>
    %c3 = arith.constant 3 : index
    %c0_11 = arith.constant 0 : index
    %9 = vector.load %arg3[%c3, %c0_11] : memref<8x256xf32, #tpu.memory_space<vmem>>, vector<1x256xf32>
    %c4 = arith.constant 4 : index
    %c0_12 = arith.constant 0 : index
    %10 = vector.load %arg3[%c4, %c0_12] : memref<8x256xf32, #tpu.memory_space<vmem>>, vector<1x128xf32>
    %cst = arith.constant dense<0.000000e+00> : vector<2x256xf32>
    %11 = tpu.matmul %0, %1, %cst {dimension_numbers = #tpu.dot_dimension_numbers<[1], [0], [0], [1], [0, 0, 1, 1], [], []>} : vector<2x512xbf16>, vector<512x256xbf16>, vector<2x256xf32> -> vector<2x256xf32>
    %12 = vector.broadcast %6 : vector<1x256xf32> to vector<2x256xf32>
    %13 = arith.addf %11, %12 : vector<2x256xf32>
    %cst_13 = arith.constant 0.000000e+00 : f32
    %14 = vector.broadcast %cst_13 : f32 to vector<2x256xf32>
    %15 = arith.maximumf %13, %14 : vector<2x256xf32>
    %16 = arith.truncf %15 : vector<2x256xf32> to vector<2x256xbf16>
    %cst_14 = arith.constant dense<0.000000e+00> : vector<2x128xf32>
    %17 = tpu.matmul %16, %2, %cst_14 {dimension_numbers = #tpu.dot_dimension_numbers<[1], [0], [0], [1], [0, 0, 1, 1], [], []>} : vector<2x256xbf16>, vector<256x128xbf16>, vector<2x128xf32> -> vector<2x128xf32>
    %18 = vector.broadcast %7 : vector<1x128xf32> to vector<2x128xf32>
    %19 = arith.addf %17, %18 : vector<2x128xf32>
    %cst_15 = arith.constant 0.000000e+00 : f32
    %20 = vector.broadcast %cst_15 : f32 to vector<2x128xf32>
    %21 = arith.maximumf %19, %20 : vector<2x128xf32>
    %22 = arith.truncf %21 : vector<2x128xf32> to vector<2x128xbf16>
    %cst_16 = arith.constant dense<0.000000e+00> : vector<2x128xf32>
    %23 = tpu.matmul %22, %5, %cst_16 {dimension_numbers = #tpu.dot_dimension_numbers<[1], [0], [0], [1], [0, 0, 1, 1], [], []>} : vector<2x128xbf16>, vector<128x128xbf16>, vector<2x128xf32> -> vector<2x128xf32>
    %24 = vector.broadcast %8 : vector<1x128xf32> to vector<2x128xf32>
    %25 = arith.addf %23, %24 : vector<2x128xf32>
    %26 = math.tanh %25 : vector<2x128xf32>
    %27 = arith.truncf %26 : vector<2x128xf32> to vector<2x128xbf16>
    %cst_17 = arith.constant dense<0.000000e+00> : vector<2x256xf32>
    %28 = tpu.matmul %27, %4, %cst_17 {dimension_numbers = #tpu.dot_dimension_numbers<[1], [0], [0], [1], [0, 0, 1, 1], [], []>} : vector<2x128xbf16>, vector<128x256xbf16>, vector<2x256xf32> -> vector<2x256xf32>
    %29 = vector.broadcast %9 : vector<1x256xf32> to vector<2x256xf32>
    %30 = arith.addf %28, %29 : vector<2x256xf32>
    %31 = math.tanh %30 : vector<2x256xf32>
    %32 = arith.truncf %31 : vector<2x256xf32> to vector<2x256xbf16>
    %cst_18 = arith.constant dense<0.000000e+00> : vector<2x128xf32>
    %33 = tpu.matmul %32, %3, %cst_18 {dimension_numbers = #tpu.dot_dimension_numbers<[1], [0], [0], [1], [0, 0, 1, 1], [], []>} : vector<2x256xbf16>, vector<256x128xbf16>, vector<2x128xf32> -> vector<2x128xf32>
    %34 = vector.broadcast %10 : vector<1x128xf32> to vector<2x128xf32>
    %35 = arith.addf %33, %34 : vector<2x128xf32>
    %c0_19 = arith.constant 0 : index
    %c0_20 = arith.constant 0 : index
    %36 = vector.load %arg4[%c0_19, %c0_20] : memref<2x128xf32, #tpu.memory_space<vmem>>, vector<2x128xf32>
    tpu.vector_store %arg4[%c0_19, %c0_20], %35 {strides = array<i32>} : memref<2x128xf32, #tpu.memory_space<vmem>>, vector<2x128xf32>,
    return
  }
  func.func @transform_0(%arg0: i32) -> (i32, i32) {
    %c0_i32 = arith.constant 0 : i32
    %c0_i32_0 = arith.constant 0 : i32
    return %arg0, %c0_i32 : i32, i32
  }
  func.func @transform_1(%arg0: i32) -> (i32, i32) {
    %c0_i32 = arith.constant 0 : i32
    %c0_i32_0 = arith.constant 0 : i32
    %c0_i32_1 = arith.constant 0 : i32
    return %c0_i32, %c0_i32_0 : i32, i32
  }
  func.func @transform_2(%arg0: i32) -> (i32, i32) {
    %c0_i32 = arith.constant 0 : i32
    %c0_i32_0 = arith.constant 0 : i32
    %c0_i32_1 = arith.constant 0 : i32
    return %c0_i32, %c0_i32_0 : i32, i32
  }
  func.func @transform_3(%arg0: i32) -> (i32, i32) {
    %c0_i32 = arith.constant 0 : i32
    %c0_i32_0 = arith.constant 0 : i32
    return %arg0, %c0_i32 : i32, i32
  }
}

</mosaic_0001>

<llo_original>
// kernel: net_forward.1
$region0: #{net_forward.1}
  #allocation0 [shape = 'u32[]', space=smem, size = 0x4, offset = 0x4, fixed_abs, tag = 'smem constant byte address 0x4 - core index']
  #allocation1 [shape = 'u32[144,128]{1,0:T(1,128)}', space=vmem, size = 0x12000, scoped, tag = 'internal scratch']
  %s0 = inlined_call_operand.vmem [shape: bf16[2,512], index: 0, kind: input, shape index: {}]
  %s1 = inlined_call_operand.hbm [shape: bf16[1024,256], index: 1, kind: input, shape index: {}]
  %s2 = inlined_call_operand.vmem [shape: f32[8,256], index: 2, kind: input, shape index: {}]
  %s3 = inlined_call_operand.vmem [shape: f32[2,128], index: 3, kind: output, shape index: {}]
  %s4 = sld [smem:[#allocation0]]
  $region26: #{net_forward.1} parent=0
    _
  %s6 = ssub.s32 1, %s4
  %s7 = scalar_select 0, %s6, %s4
  $region1: #{net_forward.1} parent=0
    #allocation2 [shape = 'u8[524288]{0}', space=vmem, size = 0x80000, scoped, tag = 'input window, operand 1, single buffered']
    #allocation3 [shape = 's32[1]{0}', space=sflag, size = 0x4, scoped, tag = 'scoped memory for net_forward.1']
    %8 = vsyncpa [#allocation3], 0
    // Predicated region
    $region2: #{net_forward.1} parent=1 // pred_check
      _
    $region3: #{net_forward.1} parent=1 // pred_check_branch
      %10 = sbr.rel (0) target = $region5
    $region4: #{net_forward.1} parent=1 // pred_region
      _
    $region5: #{net_forward.1} parent=1 // pred_fallthru
      _
    // Predicated region
    $region6: #{net_forward.1} parent=1 // pred_check
      _
    $region7: #{net_forward.1} parent=1 // pred_check_branch
      %12 = sbr.rel (0) target = $region9
    $region8: #{net_forward.1} parent=1 // pred_region
      %s14 = ssub.s32 16384, 16384
      %15 = vsyncadd [#allocation3], %s14
      %s16 = sshll.u32 [#allocation2], 4
      %s17 = int_to_ptr.vmem [resolvable:$true] %s16
      %22 = dma.hbm_to_vmem [thread:$0]  %s1, 16384, %s17, [#allocation3], 128, 128, 8
    $region9: #{net_forward.1} parent=1 // pred_fallthru
      _
    // Predicated region
    $region10: #{net_forward.1} parent=1 // pred_check
      _
    $region11: #{net_forward.1} parent=1 // pred_check_branch
      %24 = sbr.rel (0) target = $region13
    $region12: #{net_forward.1} parent=1 // pred_region
      _
    $region13: #{net_forward.1} parent=1 // pred_fallthru
      _
    // Predicated region
    $region14: #{net_forward.1} parent=1 // pred_check
      _
    $region15: #{net_forward.1} parent=1 // pred_check_branch
      %26 = sbr.rel (0) target = $region17
    $region16: #{net_forward.1} parent=1 // pred_region
      %27 = dma.done [#allocation3], 16384
    $region17: #{net_forward.1} parent=1 // pred_fallthru
      _
    %v29 = vld [vmem:[%s0] sm:$0xf]
    %v30 = vld [vmem:[#allocation2] sm:$0xff]
    %v31 = vld [vmem:[#allocation2 + $0x8] sm:$0xff]
    %v32 = vld [vmem:[#allocation2 + $0x10] sm:$0xff]
    %v33 = vld [vmem:[#allocation2 + $0x18] sm:$0xff]
    %v34 = vld [vmem:[#allocation2 + $0x20] sm:$0xff]
    %v35 = vld [vmem:[#allocation2 + $0x28] sm:$0xff]
    %v36 = vld [vmem:[#allocation2 + $0x30] sm:$0xff]
    %v37 = vld [vmem:[#allocation2 + $0x38] sm:$0xff]
    %v38 = vld [vmem:[#allocation2 + $0x40] sm:$0xff]
    %v39 = vld [vmem:[#allocation2 + $0x48] sm:$0xff]
    %v40 = vld [vmem:[#allocation2 + $0x50] sm:$0xff]
    %v41 = vld [vmem:[#allocation2 + $0x58] sm:$0xff]
    %v42 = vld [vmem:[#allocation2 + $0x60] sm:$0xff]
    %v43 = vld [vmem:[#allocation2 + $0x68] sm:$0xff]
    %v44 = vld [vmem:[#allocation2 + $0x70] sm:$0xff]
    %v45 = vld [vmem:[#allocation2 + $0x78] sm:$0xff]
    %v46 = vld [vmem:[#allocation2 + $0x80] sm:$0xff]
    %v47 = vld [vmem:[#allocation2 + $0x88] sm:$0xff]
    %v48 = vld [vmem:[#allocation2 + $0x90] sm:$0xff]
    %v49 = vld [vmem:[#allocation2 + $0x98] sm:$0xff]
    %v50 = vld [vmem:[#allocation2 + $0xa0] sm:$0xff]
    %v51 = vld [vmem:[#allocation2 + $0xa8] sm:$0xff]
    %v52 = vld [vmem:[#allocation2 + $0xb0] sm:$0xff]
    %v53 = vld [vmem:[#allocation2 + $0xb8] sm:$0xff]
    %v54 = vld [vmem:[#allocation2 + $0xc0] sm:$0xff]
    %v55 = vld [vmem:[#allocation2 + $0xc8] sm:$0xff]
    %v56 = vld [vmem:[#allocation2 + $0xd0] sm:$0xff]
    %v57 = vld [vmem:[#allocation2 + $0xd8] sm:$0xff]
    %v58 = vld [vmem:[#allocation2 + $0xe0] sm:$0xff]
    %v59 = vld [vmem:[#allocation2 + $0xe8] sm:$0xff]
    %v60 = vld [vmem:[#allocation2 + $0xf0] sm:$0xff]
    %v61 = vld [vmem:[#allocation2 + $0xf8] sm:$0xff]
    %v62 = vld [vmem:[#allocation2 + $0x100] sm:$0xff]
    %v63 = vld [vmem:[#allocation2 + $0x108] sm:$0xff]
    %v64 = vld [vmem:[#allocation2 + $0x110] sm:$0xff]
    %v65 = vld [vmem:[#allocation2 + $0x118] sm:$0xff]
    %v66 = vld [vmem:[#allocation2 + $0x120] sm:$0xff]
    %v67 = vld [vmem:[#allocation2 + $0x128] sm:$0xff]
    %v68 = vld [vmem:[#allocation2 + $0x130] sm:$0xff]
    %v69 = vld [vmem:[#allocation2 + $0x138] sm:$0xff]
    %v70 = vld [vmem:[#allocation2 + $0x140] sm:$0xff]
    %v71 = vld [vmem:[#allocation2 + $0x148] sm:$0xff]
    %v72 = vld [vmem:[#allocation2 + $0x150] sm:$0xff]
    %v73 = vld [vmem:[#allocation2 + $0x158] sm:$0xff]
    %v74 = vld [vmem:[#allocation2 + $0x160] sm:$0xff]
    %v75 = vld [vmem:[#allocation2 + $0x168] sm:$0xff]
    %v76 = vld [vmem:[#allocation2 + $0x170] sm:$0xff]
    %v77 = vld [vmem:[#allocation2 + $0x178] sm:$0xff]
    %v78 = vld [vmem:[#allocation2 + $0x180] sm:$0xff]
    %v79 = vld [vmem:[#allocation2 + $0x188] sm:$0xff]
    %v80 = vld [vmem:[#allocation2 + $0x190] sm:$0xff]
    %v81 = vld [vmem:[#allocation2 + $0x198] sm:$0xff]
    %v82 = vld [vmem:[#allocation2 + $0x1a0] sm:$0xff]
    %v83 = vld [vmem:[#allocation2 + $0x1a8] sm:$0xff]
    %v84 = vld [vmem:[#allocation2 + $0x1b0] sm:$0xff]
    %v85 = vld [vmem:[#allocation2 + $0x1b8] sm:$0xff]
    %v86 = vld [vmem:[#allocation2 + $0x1c0] sm:$0xff]
    %v87 = vld [vmem:[#allocation2 + $0x1c8] sm:$0xff]
    %v88 = vld [vmem:[#allocation2 + $0x1d0] sm:$0xff]
    %v89 = vld [vmem:[#allocation2 + $0x1d8] sm:$0xff]
    %v90 = vld [vmem:[#allocation2 + $0x1e0] sm:$0xff]
    %v91 = vld [vmem:[#allocation2 + $0x1e8] sm:$0xff]
    %v92 = vld [vmem:[#allocation2 + $0x1f0] sm:$0xff]
    %v93 = vld [vmem:[#allocation2 + $0x1f8] sm:$0xff]
    %v94 = vld [vmem:[#allocation2 + $0x200] sm:$0xf]
    %v95 = vld [vmem:[#allocation2 + $0x208] sm:$0xf]
    %v96 = vld [vmem:[#allocation2 + $0x210] sm:$0xf]
    %v97 = vld [vmem:[#allocation2 + $0x218] sm:$0xf]
    %v98 = vld [vmem:[#allocation2 + $0x220] sm:$0xf]
    %v99 = vld [vmem:[#allocation2 + $0x228] sm:$0xf]
    %v100 = vld [vmem:[#allocation2 + $0x230] sm:$0xf]
    %v101 = vld [vmem:[#allocation2 + $0x238] sm:$0xf]
    %v102 = vld [vmem:[#allocation2 + $0x240] sm:$0xf]
    %v103 = vld [vmem:[#allocation2 + $0x248] sm:$0xf]
    %v104 = vld [vmem:[#allocation2 + $0x250] sm:$0xf]
    %v105 = vld [vmem:[#allocation2 + $0x258] sm:$0xf]
    %v106 = vld [vmem:[#allocation2 + $0x260] sm:$0xf]
    %v107 = vld [vmem:[#allocation2 + $0x268] sm:$0xf]
    %v108 = vld [vmem:[#allocation2 + $0x270] sm:$0xf]
    %v109 = vld [vmem:[#allocation2 + $0x278] sm:$0xf]
    %v110 = vld [vmem:[#allocation2 + $0x280] sm:$0xf]
    %v111 = vld [vmem:[#allocation2 + $0x288] sm:$0xf]
    %v112 = vld [vmem:[#allocation2 + $0x290] sm:$0xf]
    %v113 = vld [vmem:[#allocation2 + $0x298] sm:$0xf]
    %v114 = vld [vmem:[#allocation2 + $0x2a0] sm:$0xf]
    %v115 = vld [vmem:[#allocation2 + $0x2a8] sm:$0xf]
    %v116 = vld [vmem:[#allocation2 + $0x2b0] sm:$0xf]
    %v117 = vld [vmem:[#allocation2 + $0x2b8] sm:$0xf]
    %v118 = vld [vmem:[#allocation2 + $0x2c0] sm:$0xf]
    %v119 = vld [vmem:[#allocation2 + $0x2c8] sm:$0xf]
    %v120 = vld [vmem:[#allocation2 + $0x2d0] sm:$0xf]
    %v121 = vld [vmem:[#allocation2 + $0x2d8] sm:$0xf]
    %v122 = vld [vmem:[#allocation2 + $0x2e0] sm:$0xf]
    %v123 = vld [vmem:[#allocation2 + $0x2e8] sm:$0xf]
    %v124 = vld [vmem:[#allocation2 + $0x2f0] sm:$0xf]
    %v125 = vld [vmem:[#allocation2 + $0x2f8] sm:$0xf]
    %v126 = vld [vmem:[#allocation2 + $0x204] sm:$0xf]
    %v127 = vld [vmem:[#allocation2 + $0x20c] sm:$0xf]
    %v128 = vld [vmem:[#allocation2 + $0x214] sm:$0xf]
    %v129 = vld [vmem:[#allocation2 + $0x21c] sm:$0xf]
    %v130 = vld [vmem:[#allocation2 + $0x224] sm:$0xf]
    %v131 = vld [vmem:[#allocation2 + $0x22c] sm:$0xf]
    %v132 = vld [vmem:[#allocation2 + $0x234] sm:$0xf]
    %v133 = vld [vmem:[#allocation2 + $0x23c] sm:$0xf]
    %v134 = vld [vmem:[#allocation2 + $0x244] sm:$0xf]
    %v135 = vld [vmem:[#allocation2 + $0x24c] sm:$0xf]
    %v136 = vld [vmem:[#allocation2 + $0x254] sm:$0xf]
    %v137 = vld [vmem:[#allocation2 + $0x25c] sm:$0xf]
    %v138 = vld [vmem:[#allocation2 + $0x264] sm:$0xf]
    %v139 = vld [vmem:[#allocation2 + $0x26c] sm:$0xf]
    %v140 = vld [vmem:[#allocation2 + $0x274] sm:$0xf]
    %v141 = vld [vmem:[#allocation2 + $0x27c] sm:$0xf]
    %v142 = vld [vmem:[#allocation2 + $0x284] sm:$0xf]
    %v143 = vld [vmem:[#allocation2 + $0x28c] sm:$0xf]
    %v144 = vld [vmem:[#allocation2 + $0x294] sm:$0xf]
    %v145 = vld [vmem:[#allocation2 + $0x29c] sm:$0xf]
    %v146 = vld [vmem:[#allocation2 + $0x2a4] sm:$0xf]
    %v147 = vld [vmem:[#allocation2 + $0x2ac] sm:$0xf]
    %v148 = vld [vmem:[#allocation2 + $0x2b4] sm:$0xf]
    %v149 = vld [vmem:[#allocation2 + $0x2bc] sm:$0xf]
    %v150 = vld [vmem:[#allocation2 + $0x2c4] sm:$0xf]
    %v151 = vld [vmem:[#allocation2 + $0x2cc] sm:$0xf]
    %v152 = vld [vmem:[#allocation2 + $0x2d4] sm:$0xf]
    %v153 = vld [vmem:[#allocation2 + $0x2dc] sm:$0xf]
    %v154 = vld [vmem:[#allocation2 + $0x2e4] sm:$0xf]
    %v155 = vld [vmem:[#allocation2 + $0x2ec] sm:$0xf]
    %v156 = vld [vmem:[#allocation2 + $0x2f4] sm:$0xf]
    %v157 = vld [vmem:[#allocation2 + $0x2fc] sm:$0xf]
    %v158 = vld [vmem:[#allocation2 + $0x300] sm:$0xff]
    %v159 = vld [vmem:[#allocation2 + $0x308] sm:$0xff]
    %v160 = vld [vmem:[#allocation2 + $0x310] sm:$0xff]
    %v161 = vld [vmem:[#allocation2 + $0x318] sm:$0xff]
    %v162 = vld [vmem:[#allocation2 + $0x320] sm:$0xff]
    %v163 = vld [vmem:[#allocation2 + $0x328] sm:$0xff]
    %v164 = vld [vmem:[#allocation2 + $0x330] sm:$0xff]
    %v165 = vld [vmem:[#allocation2 + $0x338] sm:$0xff]
    %v166 = vld [vmem:[#allocation2 + $0x340] sm:$0xff]
    %v167 = vld [vmem:[#allocation2 + $0x348] sm:$0xff]
    %v168 = vld [vmem:[#allocation2 + $0x350] sm:$0xff]
    %v169 = vld [vmem:[#allocation2 + $0x358] sm:$0xff]
    %v170 = vld [vmem:[#allocation2 + $0x360] sm:$0xff]
    %v171 = vld [vmem:[#allocation2 + $0x368] sm:$0xff]
    %v172 = vld [vmem:[#allocation2 + $0x370] sm:$0xff]
    %v173 = vld [vmem:[#allocation2 + $0x378] sm:$0xff]
    %v174 = vld [vmem:[#allocation2 + $0x380] sm:$0xf]
    %v175 = vld [vmem:[#allocation2 + $0x388] sm:$0xf]
    %v176 = vld [vmem:[#allocation2 + $0x390] sm:$0xf]
    %v177 = vld [vmem:[#allocation2 + $0x398] sm:$0xf]
    %v178 = vld [vmem:[#allocation2 + $0x3a0] sm:$0xf]
    %v179 = vld [vmem:[#allocation2 + $0x3a8] sm:$0xf]
    %v180 = vld [vmem:[#allocation2 + $0x3b0] sm:$0xf]
    %v181 = vld [vmem:[#allocation2 + $0x3b8] sm:$0xf]
    %v182 = vld [vmem:[#allocation2 + $0x3c0] sm:$0xf]
    %v183 = vld [vmem:[#allocation2 + $0x3c8] sm:$0xf]
    %v184 = vld [vmem:[#allocation2 + $0x3d0] sm:$0xf]
    %v185 = vld [vmem:[#allocation2 + $0x3d8] sm:$0xf]
    %v186 = vld [vmem:[#allocation2 + $0x3e0] sm:$0xf]
    %v187 = vld [vmem:[#allocation2 + $0x3e8] sm:$0xf]
    %v188 = vld [vmem:[#allocation2 + $0x3f0] sm:$0xf]
    %v189 = vld [vmem:[#allocation2 + $0x3f8] sm:$0xf]
    %v190 = vld [vmem:[%s2] ss:$8 sm:$0x3]
    %v191 = vld [vmem:[%s2 + $0x1] ss:$0 sm:$0xff]
    %v192 = vld [vmem:[%s2 + $0x2] ss:$0 sm:$0xff]
    %s193 = scalar_lea.vmem %s2, 3
    %v194 = vld [vmem:[%s193] ss:$8 sm:$0x3]
    %v195 = vld [vmem:[%s2 + $0x4] ss:$0 sm:$0xff]
    %v197 = vlaneseq
    %v198 = vshrl.u32 %v197, 7
    %v199 = vsub.s32 0, %v198
    %v200 = vrot.slane %v190, %v199
    %v201 = vlaneseq
    %v202 = vshrl.u32 %v201, 7
    %v203 = vsub.s32 1, %v202
    %v204 = vrot.slane %v190, %v203
    %v209 = vunpack.c.l.s4 1966171168
    %v210 = vunpack.c.0.s8 %v209
    %v211 = vlaneseq
    %v212 = vshrl.u32 %v211, 7
    %v213 = vsub.s32 %v210, %v212
    %v214 = vrot.slane %v29, %v213
    %v215 = vcombine.high %v214, %v214
    %v217 = vunpack.c.l.s4 1966171168
    %v218 = vunpack.c.0.s8 %v217
    %v219 = vlaneseq
    %v220 = vshrl.u32 %v219, 7
    %v221 = vsub.s32 %v218, %v220
    %v222 = vrot.slane %v214, %v221
    %v224 = vunpack.c.l.s4 1966171168
    %v225 = vunpack.c.0.s8 %v224
    %v226 = vlaneseq
    %v227 = vshrl.u32 %v226, 7
    %v228 = vsub.s32 %v225, %v227
    %v229 = vrot.slane %v215, %v228
    %v230 = vcombine.high %v222, %v222
    %v231 = vcombine.high %v229, %v229
    %v300 = vunpack.c.l.b16 %v30
    %v301 = vunpack.c.h.b16 %v30
    %v302 = vunpack.c.l.b16 %v31
    %v303 = vunpack.c.h.b16 %v31
    %v304 = vunpack.c.l.b16 %v32
    %v305 = vunpack.c.h.b16 %v32
    %v306 = vunpack.c.l.b16 %v33
    %v307 = vunpack.c.h.b16 %v33
    %v308 = vunpack.c.l.b16 %v34
    %v309 = vunpack.c.h.b16 %v34
    %v310 = vunpack.c.l.b16 %v35
    %v311 = vunpack.c.h.b16 %v35
    %v312 = vunpack.c.l.b16 %v36
    %v313 = vunpack.c.h.b16 %v36
    %v314 = vunpack.c.l.b16 %v37
    %v315 = vunpack.c.h.b16 %v37
    %v316 = vunpack.c.l.b16 %v38
    %v317 = vunpack.c.h.b16 %v38
    %v318 = vunpack.c.l.b16 %v39
    %v319 = vunpack.c.h.b16 %v39
    %v320 = vunpack.c.l.b16 %v40
    %v321 = vunpack.c.h.b16 %v40
    %v322 = vunpack.c.l.b16 %v41
    %v323 = vunpack.c.h.b16 %v41
    %v324 = vunpack.c.l.b16 %v42
    %v325 = vunpack.c.h.b16 %v42
    %v326 = vunpack.c.l.b16 %v43
    %v327 = vunpack.c.h.b16 %v43
    %v328 = vunpack.c.l.b16 %v44
    %v329 = vunpack.c.h.b16 %v44
    %v330 = vunpack.c.l.b16 %v45
    %v331 = vunpack.c.h.b16 %v45
    %v332 = vunpack.c.l.b16 %v46
    %v333 = vunpack.c.h.b16 %v46
    %v334 = vunpack.c.l.b16 %v47
    %v335 = vunpack.c.h.b16 %v47
    %v336 = vunpack.c.l.b16 %v48
    %v337 = vunpack.c.h.b16 %v48
    %v338 = vunpack.c.l.b16 %v49
    %v339 = vunpack.c.h.b16 %v49
    %v340 = vunpack.c.l.b16 %v50
    %v341 = vunpack.c.h.b16 %v50
    %v342 = vunpack.c.l.b16 %v51
    %v343 = vunpack.c.h.b16 %v51
    %v344 = vunpack.c.l.b16 %v52
    %v345 = vunpack.c.h.b16 %v52
    %v346 = vunpack.c.l.b16 %v53
    %v347 = vunpack.c.h.b16 %v53
    %v348 = vunpack.c.l.b16 %v54
    %v349 = vunpack.c.h.b16 %v54
    %v350 = vunpack.c.l.b16 %v55
    %v351 = vunpack.c.h.b16 %v55
    %v352 = vunpack.c.l.b16 %v56
    %v353 = vunpack.c.h.b16 %v56
    %v354 = vunpack.c.l.b16 %v57
    %v355 = vunpack.c.h.b16 %v57
    %v356 = vunpack.c.l.b16 %v58
    %v357 = vunpack.c.h.b16 %v58
    %v358 = vunpack.c.l.b16 %v59
    %v359 = vunpack.c.h.b16 %v59
    %v360 = vunpack.c.l.b16 %v60
    %v361 = vunpack.c.h.b16 %v60
    %v362 = vunpack.c.l.b16 %v61
    %v363 = vunpack.c.h.b16 %v61
    %v364 = vunpack.c.l.b16 %v62
    %v365 = vunpack.c.h.b16 %v62
    %v366 = vunpack.c.l.b16 %v63
    %v367 = vunpack.c.h.b16 %v63
    %v368 = vunpack.c.l.b16 %v64
    %v369 = vunpack.c.h.b16 %v64
    %v370 = vunpack.c.l.b16 %v65
    %v371 = vunpack.c.h.b16 %v65
    %v372 = vunpack.c.l.b16 %v66
    %v373 = vunpack.c.h.b16 %v66
    %v374 = vunpack.c.l.b16 %v67
    %v375 = vunpack.c.h.b16 %v67
    %v376 = vunpack.c.l.b16 %v68
    %v377 = vunpack.c.h.b16 %v68
    %v378 = vunpack.c.l.b16 %v69
    %v379 = vunpack.c.h.b16 %v69
    %v380 = vunpack.c.l.b16 %v70
    %v381 = vunpack.c.h.b16 %v70
    %v382 = vunpack.c.l.b16 %v71
    %v383 = vunpack.c.h.b16 %v71
    %v384 = vunpack.c.l.b16 %v72
    %v385 = vunpack.c.h.b16 %v72
    %v386 = vunpack.c.l.b16 %v73
    %v387 = vunpack.c.h.b16 %v73
    %v388 = vunpack.c.l.b16 %v74
    %v389 = vunpack.c.h.b16 %v74
    %v390 = vunpack.c.l.b16 %v75
    %v391 = vunpack.c.h.b16 %v75
    %v392 = vunpack.c.l.b16 %v76
    %v393 = vunpack.c.h.b16 %v76
    %v394 = vunpack.c.l.b16 %v77
    %v395 = vunpack.c.h.b16 %v77
    %v396 = vunpack.c.l.b16 %v78
    %v397 = vunpack.c.h.b16 %v78
    %v398 = vunpack.c.l.b16 %v79
    %v399 = vunpack.c.h.b16 %v79
    %v400 = vunpack.c.l.b16 %v80
    %v401 = vunpack.c.h.b16 %v80
    %v402 = vunpack.c.l.b16 %v81
    %v403 = vunpack.c.h.b16 %v81
    %v404 = vunpack.c.l.b16 %v82
    %v405 = vunpack.c.h.b16 %v82
    %v406 = vunpack.c.l.b16 %v83
    %v407 = vunpack.c.h.b16 %v83
    %v408 = vunpack.c.l.b16 %v84
    %v409 = vunpack.c.h.b16 %v84
    %v410 = vunpack.c.l.b16 %v85
    %v411 = vunpack.c.h.b16 %v85
    %v412 = vunpack.c.l.b16 %v86
    %v413 = vunpack.c.h.b16 %v86
    %v414 = vunpack.c.l.b16 %v87
    %v415 = vunpack.c.h.b16 %v87
    %v416 = vunpack.c.l.b16 %v88
    %v417 = vunpack.c.h.b16 %v88
    %v418 = vunpack.c.l.b16 %v89
    %v419 = vunpack.c.h.b16 %v89
    %v420 = vunpack.c.l.b16 %v90
    %v421 = vunpack.c.h.b16 %v90
    %v422 = vunpack.c.l.b16 %v91
    %v423 = vunpack.c.h.b16 %v91
    %v424 = vunpack.c.l.b16 %v92
    %v425 = vunpack.c.h.b16 %v92
    %v426 = vunpack.c.l.b16 %v93
    %v427 = vunpack.c.h.b16 %v93
    %v428 = vpack.c.b16 %v302, %v300
    %v429 = vpack.c.b16 %v303, %v301
    %v430 = vpack.c.b16 %v306, %v304
    %v431 = vpack.c.b16 %v307, %v305
    %v432 = vpack.c.b16 %v310, %v308
    %v433 = vpack.c.b16 %v311, %v309
    %v434 = vpack.c.b16 %v314, %v312
    %v435 = vpack.c.b16 %v315, %v313
    %v436 = vpack.c.b16 %v318, %v316
    %v437 = vpack.c.b16 %v319, %v317
    %v438 = vpack.c.b16 %v322, %v320
    %v439 = vpack.c.b16 %v323, %v321
    %v440 = vpack.c.b16 %v326, %v324
    %v441 = vpack.c.b16 %v327, %v325
    %v442 = vpack.c.b16 %v330, %v328
    %v443 = vpack.c.b16 %v331, %v329
    %v444 = vpack.c.b16 %v334, %v332
    %v445 = vpack.c.b16 %v335, %v333
    %v446 = vpack.c.b16 %v338, %v336
    %v447 = vpack.c.b16 %v339, %v337
    %v448 = vpack.c.b16 %v342, %v340
    %v449 = vpack.c.b16 %v343, %v341
    %v450 = vpack.c.b16 %v346, %v344
    %v451 = vpack.c.b16 %v347, %v345
    %v452 = vpack.c.b16 %v350, %v348
    %v453 = vpack.c.b16 %v351, %v349
    %v454 = vpack.c.b16 %v354, %v352
    %v455 = vpack.c.b16 %v355, %v353
    %v456 = vpack.c.b16 %v358, %v356
    %v457 = vpack.c.b16 %v359, %v357
    %v458 = vpack.c.b16 %v362, %v360
    %v459 = vpack.c.b16 %v363, %v361
    %v460 = vpack.c.b16 %v366, %v364
    %v461 = vpack.c.b16 %v367, %v365
    %v462 = vpack.c.b16 %v370, %v368
    %v463 = vpack.c.b16 %v371, %v369
    %v464 = vpack.c.b16 %v374, %v372
    %v465 = vpack.c.b16 %v375, %v373
    %v466 = vpack.c.b16 %v378, %v376
    %v467 = vpack.c.b16 %v379, %v377
    %v468 = vpack.c.b16 %v382, %v380
    %v469 = vpack.c.b16 %v383, %v381
    %v470 = vpack.c.b16 %v386, %v384
    %v471 = vpack.c.b16 %v387, %v385
    %v472 = vpack.c.b16 %v390, %v388
    %v473 = vpack.c.b16 %v391, %v389
    %v474 = vpack.c.b16 %v394, %v392
    %v475 = vpack.c.b16 %v395, %v393
    %v476 = vpack.c.b16 %v398, %v396
    %v477 = vpack.c.b16 %v399, %v397
    %v478 = vpack.c.b16 %v402, %v400
    %v479 = vpack.c.b16 %v403, %v401
    %v480 = vpack.c.b16 %v406, %v404
    %v481 = vpack.c.b16 %v407, %v405
    %v482 = vpack.c.b16 %v410, %v408
    %v483 = vpack.c.b16 %v411, %v409
    %v484 = vpack.c.b16 %v414, %v412
    %v485 = vpack.c.b16 %v415, %v413
    %v486 = vpack.c.b16 %v418, %v416
    %v487 = vpack.c.b16 %v419, %v417
    %v488 = vpack.c.b16 %v422, %v420
    %v489 = vpack.c.b16 %v423, %v421
    %v490 = vpack.c.b16 %v426, %v424
    %v491 = vpack.c.b16 %v427, %v425
    %556 = vmatprep.subr.bf16.mxu0 %v443
    %557 = vmatpush1.bf16.msra.mxu0 %v442
    %558 = vmatprep.subr.bf16.mxu0 %v441
    %559 = vmatpush1.bf16.msra.mxu0 %v440
    %560 = vmatprep.subr.bf16.mxu0 %v439
    %561 = vmatpush1.bf16.msra.mxu0 %v438
    %562 = vmatprep.subr.bf16.mxu0 %v437
    %563 = vmatpush1.bf16.msra.mxu0 %v436
    %564 = vmatprep.subr.bf16.mxu0 %v435
    %565 = vmatpush1.bf16.msra.mxu0 %v434
    %566 = vmatprep.subr.bf16.mxu0 %v433
    %567 = vmatpush1.bf16.msra.mxu0 %v432
    %568 = vmatprep.subr.bf16.mxu0 %v431
    %569 = vmatpush1.bf16.msra.mxu0 %v430
    %570 = vmatprep.subr.bf16.mxu0 %v429
    %571 = vmatpush1.bf16.msra.mxu0 %v428
    %572 = vmatprep.subr.bf16.mxu0 %v459
    %573 = vmatpush2.bf16.msra.mxu0 %v458
    %574 = vmatprep.subr.bf16.mxu0 %v457
    %575 = vmatpush2.bf16.msra.mxu0 %v456
    %576 = vmatprep.subr.bf16.mxu0 %v455
    %577 = vmatpush2.bf16.msra.mxu0 %v454
    %578 = vmatprep.subr.bf16.mxu0 %v453
    %579 = vmatpush2.bf16.msra.mxu0 %v452
    %580 = vmatprep.subr.bf16.mxu0 %v451
    %581 = vmatpush2.bf16.msra.mxu0 %v450
    %582 = vmatprep.subr.bf16.mxu0 %v449
    %583 = vmatpush2.bf16.msra.mxu0 %v448
    %584 = vmatprep.subr.bf16.mxu0 %v447
    %585 = vmatpush2.bf16.msra.mxu0 %v446
    %586 = vmatprep.subr.bf16.mxu0 %v445
    %587 = vmatpush2.bf16.msra.mxu0 %v444
    %588 = vmatprep.mubr.bf16.mxu0 %v229
    %589 = vmatmul.mubr.bf16.gmra.mxu0 %v222
    %v590 = vpop.f32.mrf.mxu0
    %v591 = vadd.f32 %v200, %v590
    %v592 = vpop.f32.mrf.mxu0
    %v593 = vadd.f32 %v204, %v592
    %v594 = vpop.f32.mrf.mxu0
    %v595 = vpop.f32.mrf.mxu0
    %596 = vdwg.mxu0
    %597 = vmatprep.subr.bf16.mxu0 %v475
    %598 = vmatpush1.bf16.msra.mxu0 %v474
    %599 = vmatprep.subr.bf16.mxu0 %v473
    %600 = vmatpush1.bf16.msra.mxu0 %v472
    %601 = vmatprep.subr.bf16.mxu0 %v471
    %602 = vmatpush1.bf16.msra.mxu0 %v470
    %603 = vmatprep.subr.bf16.mxu0 %v469
    %604 = vmatpush1.bf16.msra.mxu0 %v468
    %605 = vmatprep.subr.bf16.mxu0 %v467
    %606 = vmatpush1.bf16.msra.mxu0 %v466
    %607 = vmatprep.subr.bf16.mxu0 %v465
    %608 = vmatpush1.bf16.msra.mxu0 %v464
    %609 = vmatprep.subr.bf16.mxu0 %v463
    %610 = vmatpush1.bf16.msra.mxu0 %v462
    %611 = vmatprep.subr.bf16.mxu0 %v461
    %612 = vmatpush1.bf16.msra.mxu0 %v460
    %613 = vmatprep.subr.bf16.mxu0 %v491
    %614 = vmatpush2.bf16.msra.mxu0 %v490
    %615 = vmatprep.subr.bf16.mxu0 %v489
    %616 = vmatpush2.bf16.msra.mxu0 %v488
    %617 = vmatprep.subr.bf16.mxu0 %v487
    %618 = vmatpush2.bf16.msra.mxu0 %v486
    %619 = vmatprep.subr.bf16.mxu0 %v485
    %620 = vmatpush2.bf16.msra.mxu0 %v484
    %621 = vmatprep.subr.bf16.mxu0 %v483
    %622 = vmatpush2.bf16.msra.mxu0 %v482
    %623 = vmatprep.subr.bf16.mxu0 %v481
    %624 = vmatpush2.bf16.msra.mxu0 %v480
    %625 = vmatprep.subr.bf16.mxu0 %v479
    %626 = vmatpush2.bf16.msra.mxu0 %v478
    %627 = vmatprep.subr.bf16.mxu0 %v477
    %628 = vmatpush2.bf16.msra.mxu0 %v476
    %629 = vmatprep.mubr.bf16.mxu0 %v231
    %630 = vmatmul.mubr.bf16.gmra.mxu0 %v230
    %v631 = vpop.f32.mrf.mxu0
    %v632 = vadd.f32 %v591, %v631
    %v633 = vpop.f32.mrf.mxu0
    %v634 = vadd.f32 %v593, %v633
    %v635 = vpop.f32.mrf.mxu0
    %v636 = vpop.f32.mrf.mxu0
    %637 = vdwg.mxu0
    %v638 = vmax.f32 %v632, 0.0
    %v639 = vmax.f32 %v634, 0.0
    %v640 = vpack.c.bf16 %v638, %v638
    %v641 = vpack.c.bf16 %v639, %v639
    %v674 = vunpack.c.l.b16 %v94
    %v675 = vunpack.c.l.b16 %v95
    %v676 = vunpack.c.l.b16 %v96
    %v677 = vunpack.c.l.b16 %v97
    %v678 = vunpack.c.l.b16 %v98
    %v679 = vunpack.c.l.b16 %v99
    %v680 = vunpack.c.l.b16 %v100
    %v681 = vunpack.c.l.b16 %v101
    %v682 = vunpack.c.l.b16 %v102
    %v683 = vunpack.c.l.b16 %v103
    %v684 = vunpack.c.l.b16 %v104
    %v685 = vunpack.c.l.b16 %v105
    %v686 = vunpack.c.l.b16 %v106
    %v687 = vunpack.c.l.b16 %v107
    %v688 = vunpack.c.l.b16 %v108
    %v689 = vunpack.c.l.b16 %v109
    %v690 = vunpack.c.l.b16 %v110
    %v691 = vunpack.c.l.b16 %v111
    %v692 = vunpack.c.l.b16 %v112
    %v693 = vunpack.c.l.b16 %v113
    %v694 = vunpack.c.l.b16 %v114
    %v695 = vunpack.c.l.b16 %v115
    %v696 = vunpack.c.l.b16 %v116
    %v697 = vunpack.c.l.b16 %v117
    %v698 = vunpack.c.l.b16 %v118
    %v699 = vunpack.c.l.b16 %v119
    %v700 = vunpack.c.l.b16 %v120
    %v701 = vunpack.c.l.b16 %v121
    %v702 = vunpack.c.l.b16 %v122
    %v703 = vunpack.c.l.b16 %v123
    %v704 = vunpack.c.l.b16 %v124
    %v705 = vunpack.c.l.b16 %v125
    %v706 = vpack.c.b16 %v675, %v674
    %v707 = vpack.c.b16 %v677, %v676
    %v708 = vpack.c.b16 %v679, %v678
    %v709 = vpack.c.b16 %v681, %v680
    %v710 = vpack.c.b16 %v683, %v682
    %v711 = vpack.c.b16 %v685, %v684
    %v712 = vpack.c.b16 %v687, %v686
    %v713 = vpack.c.b16 %v689, %v688
    %v714 = vpack.c.b16 %v691, %v690
    %v715 = vpack.c.b16 %v693, %v692
    %v716 = vpack.c.b16 %v695, %v694
    %v717 = vpack.c.b16 %v697, %v696
    %v718 = vpack.c.b16 %v699, %v698
    %v719 = vpack.c.b16 %v701, %v700
    %v720 = vpack.c.b16 %v703, %v702
    %v721 = vpack.c.b16 %v705, %v704
    %738 = vmatprep.subr.bf16.mxu0 0
    %739 = vmatpush1.bf16.msra.mxu0 %v713
    %740 = vmatprep.subr.bf16.mxu0 0
    %741 = vmatpush1.bf16.msra.mxu0 %v712
    %742 = vmatprep.subr.bf16.mxu0 0
    %743 = vmatpush1.bf16.msra.mxu0 %v711
    %744 = vmatprep.subr.bf16.mxu0 0
    %745 = vmatpush1.bf16.msra.mxu0 %v710
    %746 = vmatprep.subr.bf16.mxu0 0
    %747 = vmatpush1.bf16.msra.mxu0 %v709
    %748 = vmatprep.subr.bf16.mxu0 0
    %749 = vmatpush1.bf16.msra.mxu0 %v708
    %750 = vmatprep.subr.bf16.mxu0 0
    %751 = vmatpush1.bf16.msra.mxu0 %v707
    %752 = vmatprep.subr.bf16.mxu0 0
    %753 = vmatpush1.bf16.msra.mxu0 %v706
    %754 = vmatprep.subr.bf16.mxu0 0
    %755 = vmatpush2.bf16.msra.mxu0 %v721
    %756 = vmatprep.subr.bf16.mxu0 0
    %757 = vmatpush2.bf16.msra.mxu0 %v720
    %758 = vmatprep.subr.bf16.mxu0 0
    %759 = vmatpush2.bf16.msra.mxu0 %v719
    %760 = vmatprep.subr.bf16.mxu0 0
    %761 = vmatpush2.bf16.msra.mxu0 %v718
    %762 = vmatprep.subr.bf16.mxu0 0
    %763 = vmatpush2.bf16.msra.mxu0 %v717
    %764 = vmatprep.subr.bf16.mxu0 0
    %765 = vmatpush2.bf16.msra.mxu0 %v716
    %766 = vmatprep.subr.bf16.mxu0 0
    %767 = vmatpush2.bf16.msra.mxu0 %v715
    %768 = vmatprep.subr.bf16.mxu0 0
    %769 = vmatpush2.bf16.msra.mxu0 %v714
    %770 = vmatprep.mubr.bf16.mxu0 %v641
    %771 = vmatmul.mubr.bf16.gmra.mxu0 %v640
    %v772 = vpop.f32.mrf.mxu0
    %v773 = vadd.f32 %v191, %v772
    %v774 = vpop.f32.mrf.mxu0
    %v775 = vpop.f32.mrf.mxu0
    %v776 = vpop.f32.mrf.mxu0
    %777 = vdwg.mxu0
    %v778 = vmax.f32 %v773, 0.0
    %v779 = vpack.c.bf16 %v778, %v778
    %v796 = vunpack.c.l.b16 %v174
    %v797 = vunpack.c.l.b16 %v175
    %v798 = vunpack.c.l.b16 %v176
    %v799 = vunpack.c.l.b16 %v177
    %v800 = vunpack.c.l.b16 %v178
    %v801 = vunpack.c.l.b16 %v179
    %v802 = vunpack.c.l.b16 %v180
    %v803 = vunpack.c.l.b16 %v181
    %v804 = vunpack.c.l.b16 %v182
    %v805 = vunpack.c.l.b16 %v183
    %v806 = vunpack.c.l.b16 %v184
    %v807 = vunpack.c.l.b16 %v185
    %v808 = vunpack.c.l.b16 %v186
    %v809 = vunpack.c.l.b16 %v187
    %v810 = vunpack.c.l.b16 %v188
    %v811 = vunpack.c.l.b16 %v189
    %v812 = vpack.c.b16 %v797, %v796
    %v813 = vpack.c.b16 %v799, %v798
    %v814 = vpack.c.b16 %v801, %v800
    %v815 = vpack.c.b16 %v803, %v802
    %v816 = vpack.c.b16 %v805, %v804
    %v817 = vpack.c.b16 %v807, %v806
    %v818 = vpack.c.b16 %v809, %v808
    %v819 = vpack.c.b16 %v811, %v810
    %828 = vmatprep.subr.bf16.mxu0 0
    %829 = vmatpush1.bf16.msra.mxu0 %v819
    %830 = vmatprep.subr.bf16.mxu0 0
    %831 = vmatpush1.bf16.msra.mxu0 %v818
    %832 = vmatprep.subr.bf16.mxu0 0
    %833 = vmatpush1.bf16.msra.mxu0 %v817
    %834 = vmatprep.subr.bf16.mxu0 0
    %835 = vmatpush1.bf16.msra.mxu0 %v816
    %836 = vmatprep.subr.bf16.mxu0 0
    %837 = vmatpush1.bf16.msra.mxu0 %v815
    %838 = vmatprep.subr.bf16.mxu0 0
    %839 = vmatpush1.bf16.msra.mxu0 %v814
    %840 = vmatprep.subr.bf16.mxu0 0
    %841 = vmatpush1.bf16.msra.mxu0 %v813
    %842 = vmatprep.subr.bf16.mxu0 0
    %843 = vmatpush1.bf16.msra.mxu0 %v812
    %844 = vmatprep.subr.bf16.mxu0 0
    %845 = vmatpush2.bf16.msra.mxu0 0
    %846 = vmatprep.subr.bf16.mxu0 0
    %847 = vmatpush2.bf16.msra.mxu0 0
    %848 = vmatprep.subr.bf16.mxu0 0
    %849 = vmatpush2.bf16.msra.mxu0 0
    %850 = vmatprep.subr.bf16.mxu0 0
    %851 = vmatpush2.bf16.msra.mxu0 0
    %852 = vmatprep.subr.bf16.mxu0 0
    %853 = vmatpush2.bf16.msra.mxu0 0
    %854 = vmatprep.subr.bf16.mxu0 0
    %855 = vmatpush2.bf16.msra.mxu0 0
    %856 = vmatprep.subr.bf16.mxu0 0
    %857 = vmatpush2.bf16.msra.mxu0 0
    %858 = vmatprep.subr.bf16.mxu0 0
    %859 = vmatpush2.bf16.msra.mxu0 0
    %860 = vmatprep.mubr.bf16.mxu0 0
    %861 = vmatmul.mubr.bf16.gmra.mxu0 %v779
    %v862 = vpop.f32.mrf.mxu0
    %v863 = vadd.f32 %v192, %v862
    %v864 = vpop.f32.mrf.mxu0
    %v865 = vpop.f32.mrf.mxu0
    %v866 = vpop.f32.mrf.mxu0
    %867 = vdwg.mxu0
    %v868 = vtanh.pop %v863
    %v869 = vpack.c.bf16 %v868, %v868
    %v871 = vlaneseq
    %v872 = vshrl.u32 %v871, 7
    %v873 = vsub.s32 0, %v872
    %v874 = vrot.slane %v194, %v873
    %v875 = vlaneseq
    %v876 = vshrl.u32 %v875, 7
    %v877 = vsub.s32 1, %v876
    %v878 = vrot.slane %v194, %v877
    %v897 = vunpack.c.l.b16 %v158
    %v898 = vunpack.c.h.b16 %v158
    %v899 = vunpack.c.l.b16 %v159
    %v900 = vunpack.c.h.b16 %v159
    %v901 = vunpack.c.l.b16 %v160
    %v902 = vunpack.c.h.b16 %v160
    %v903 = vunpack.c.l.b16 %v161
    %v904 = vunpack.c.h.b16 %v161
    %v905 = vunpack.c.l.b16 %v162
    %v906 = vunpack.c.h.b16 %v162
    %v907 = vunpack.c.l.b16 %v163
    %v908 = vunpack.c.h.b16 %v163
    %v909 = vunpack.c.l.b16 %v164
    %v910 = vunpack.c.h.b16 %v164
    %v911 = vunpack.c.l.b16 %v165
    %v912 = vunpack.c.h.b16 %v165
    %v913 = vunpack.c.l.b16 %v166
    %v914 = vunpack.c.h.b16 %v166
    %v915 = vunpack.c.l.b16 %v167
    %v916 = vunpack.c.h.b16 %v167
    %v917 = vunpack.c.l.b16 %v168
    %v918 = vunpack.c.h.b16 %v168
    %v919 = vunpack.c.l.b16 %v169
    %v920 = vunpack.c.h.b16 %v169
    %v921 = vunpack.c.l.b16 %v170
    %v922 = vunpack.c.h.b16 %v170
    %v923 = vunpack.c.l.b16 %v171
    %v924 = vunpack.c.h.b16 %v171
    %v925 = vunpack.c.l.b16 %v172
    %v926 = vunpack.c.h.b16 %v172
    %v927 = vunpack.c.l.b16 %v173
    %v928 = vunpack.c.h.b16 %v173
    %v929 = vpack.c.b16 %v899, %v897
    %v930 = vpack.c.b16 %v900, %v898
    %v931 = vpack.c.b16 %v903, %v901
    %v932 = vpack.c.b16 %v904, %v902
    %v933 = vpack.c.b16 %v907, %v905
    %v934 = vpack.c.b16 %v908, %v906
    %v935 = vpack.c.b16 %v911, %v909
    %v936 = vpack.c.b16 %v912, %v910
    %v937 = vpack.c.b16 %v915, %v913
    %v938 = vpack.c.b16 %v916, %v914
    %v939 = vpack.c.b16 %v919, %v917
    %v940 = vpack.c.b16 %v920, %v918
    %v941 = vpack.c.b16 %v923, %v921
    %v942 = vpack.c.b16 %v924, %v922
    %v943 = vpack.c.b16 %v927, %v925
    %v944 = vpack.c.b16 %v928, %v926
    %961 = vmatprep.subr.bf16.mxu0 %v944
    %962 = vmatpush1.bf16.msra.mxu0 %v943
    %963 = vmatprep.subr.bf16.mxu0 %v942
    %964 = vmatpush1.bf16.msra.mxu0 %v941
    %965 = vmatprep.subr.bf16.mxu0 %v940
    %966 = vmatpush1.bf16.msra.mxu0 %v939
    %967 = vmatprep.subr.bf16.mxu0 %v938
    %968 = vmatpush1.bf16.msra.mxu0 %v937
    %969 = vmatprep.subr.bf16.mxu0 %v936
    %970 = vmatpush1.bf16.msra.mxu0 %v935
    %971 = vmatprep.subr.bf16.mxu0 %v934
    %972 = vmatpush1.bf16.msra.mxu0 %v933
    %973 = vmatprep.subr.bf16.mxu0 %v932
    %974 = vmatpush1.bf16.msra.mxu0 %v931
    %975 = vmatprep.subr.bf16.mxu0 %v930
    %976 = vmatpush1.bf16.msra.mxu0 %v929
    %977 = vmatprep.subr.bf16.mxu0 0
    %978 = vmatpush2.bf16.msra.mxu0 0
    %979 = vmatprep.subr.bf16.mxu0 0
    %980 = vmatpush2.bf16.msra.mxu0 0
    %981 = vmatprep.subr.bf16.mxu0 0
    %982 = vmatpush2.bf16.msra.mxu0 0
    %983 = vmatprep.subr.bf16.mxu0 0
    %984 = vmatpush2.bf16.msra.mxu0 0
    %985 = vmatprep.subr.bf16.mxu0 0
    %986 = vmatpush2.bf16.msra.mxu0 0
    %987 = vmatprep.subr.bf16.mxu0 0
    %988 = vmatpush2.bf16.msra.mxu0 0
    %989 = vmatprep.subr.bf16.mxu0 0
    %990 = vmatpush2.bf16.msra.mxu0 0
    %991 = vmatprep.subr.bf16.mxu0 0
    %992 = vmatpush2.bf16.msra.mxu0 0
    %993 = vmatprep.mubr.bf16.mxu0 0
    %994 = vmatmul.mubr.bf16.gmra.mxu0 %v869
    %v995 = vpop.f32.mrf.mxu0
    %v996 = vadd.f32 %v874, %v995
    %v997 = vpop.f32.mrf.mxu0
    %v998 = vadd.f32 %v878, %v997
    %v999 = vpop.f32.mrf.mxu0
    %v1000 = vpop.f32.mrf.mxu0
    %1001 = vdwg.mxu0
    %v1002 = vtanh.pop %v996
    %v1003 = vtanh.pop %v998
    %v1004 = vpack.c.bf16 %v1002, %v1002
    %v1005 = vpack.c.bf16 %v1003, %v1003
    %v1038 = vunpack.c.l.b16 %v126
    %v1039 = vunpack.c.l.b16 %v127
    %v1040 = vunpack.c.l.b16 %v128
    %v1041 = vunpack.c.l.b16 %v129
    %v1042 = vunpack.c.l.b16 %v130
    %v1043 = vunpack.c.l.b16 %v131
    %v1044 = vunpack.c.l.b16 %v132
    %v1045 = vunpack.c.l.b16 %v133
    %v1046 = vunpack.c.l.b16 %v134
    %v1047 = vunpack.c.l.b16 %v135
    %v1048 = vunpack.c.l.b16 %v136
    %v1049 = vunpack.c.l.b16 %v137
    %v1050 = vunpack.c.l.b16 %v138
    %v1051 = vunpack.c.l.b16 %v139
    %v1052 = vunpack.c.l.b16 %v140
    %v1053 = vunpack.c.l.b16 %v141
    %v1054 = vunpack.c.l.b16 %v142
    %v1055 = vunpack.c.l.b16 %v143
    %v1056 = vunpack.c.l.b16 %v144
    %v1057 = vunpack.c.l.b16 %v145
    %v1058 = vunpack.c.l.b16 %v146
    %v1059 = vunpack.c.l.b16 %v147
    %v1060 = vunpack.c.l.b16 %v148
    %v1061 = vunpack.c.l.b16 %v149
    %v1062 = vunpack.c.l.b16 %v150
    %v1063 = vunpack.c.l.b16 %v151
    %v1064 = vunpack.c.l.b16 %v152
    %v1065 = vunpack.c.l.b16 %v153
    %v1066 = vunpack.c.l.b16 %v154
    %v1067 = vunpack.c.l.b16 %v155
    %v1068 = vunpack.c.l.b16 %v156
    %v1069 = vunpack.c.l.b16 %v157
    %v1070 = vpack.c.b16 %v1039, %v1038
    %v1071 = vpack.c.b16 %v1041, %v1040
    %v1072 = vpack.c.b16 %v1043, %v1042
    %v1073 = vpack.c.b16 %v1045, %v1044
    %v1074 = vpack.c.b16 %v1047, %v1046
    %v1075 = vpack.c.b16 %v1049, %v1048
    %v1076 = vpack.c.b16 %v1051, %v1050
    %v1077 = vpack.c.b16 %v1053, %v1052
    %v1078 = vpack.c.b16 %v1055, %v1054
    %v1079 = vpack.c.b16 %v1057, %v1056
    %v1080 = vpack.c.b16 %v1059, %v1058
    %v1081 = vpack.c.b16 %v1061, %v1060
    %v1082 = vpack.c.b16 %v1063, %v1062
    %v1083 = vpack.c.b16 %v1065, %v1064
    %v1084 = vpack.c.b16 %v1067, %v1066
    %v1085 = vpack.c.b16 %v1069, %v1068
    %1102 = vmatprep.subr.bf16.mxu0 0
    %1103 = vmatpush1.bf16.msra.mxu0 %v1077
    %1104 = vmatprep.subr.bf16.mxu0 0
    %1105 = vmatpush1.bf16.msra.mxu0 %v1076
    %1106 = vmatprep.subr.bf16.mxu0 0
    %1107 = vmatpush1.bf16.msra.mxu0 %v1075
    %1108 = vmatprep.subr.bf16.mxu0 0
    %1109 = vmatpush1.bf16.msra.mxu0 %v1074
    %1110 = vmatprep.subr.bf16.mxu0 0
    %1111 = vmatpush1.bf16.msra.mxu0 %v1073
    %1112 = vmatprep.subr.bf16.mxu0 0
    %1113 = vmatpush1.bf16.msra.mxu0 %v1072
    %1114 = vmatprep.subr.bf16.mxu0 0
    %1115 = vmatpush1.bf16.msra.mxu0 %v1071
    %1116 = vmatprep.subr.bf16.mxu0 0
    %1117 = vmatpush1.bf16.msra.mxu0 %v1070
    %1118 = vmatprep.subr.bf16.mxu0 0
    %1119 = vmatpush2.bf16.msra.mxu0 %v1085
    %1120 = vmatprep.subr.bf16.mxu0 0
    %1121 = vmatpush2.bf16.msra.mxu0 %v1084
    %1122 = vmatprep.subr.bf16.mxu0 0
    %1123 = vmatpush2.bf16.msra.mxu0 %v1083
    %1124 = vmatprep.subr.bf16.mxu0 0
    %1125 = vmatpush2.bf16.msra.mxu0 %v1082
    %1126 = vmatprep.subr.bf16.mxu0 0
    %1127 = vmatpush2.bf16.msra.mxu0 %v1081
    %1128 = vmatprep.subr.bf16.mxu0 0
    %1129 = vmatpush2.bf16.msra.mxu0 %v1080
    %1130 = vmatprep.subr.bf16.mxu0 0
    %1131 = vmatpush2.bf16.msra.mxu0 %v1079
    %1132 = vmatprep.subr.bf16.mxu0 0
    %1133 = vmatpush2.bf16.msra.mxu0 %v1078
    %1134 = vmatprep.mubr.bf16.mxu0 %v1005
    %1135 = vmatmul.mubr.bf16.gmra.mxu0 %v1004
    %v1136 = vpop.f32.mrf.mxu0
    %v1137 = vadd.f32 %v195, %v1136
    %v1138 = vpop.f32.mrf.mxu0
    %v1139 = vpop.f32.mrf.mxu0
    %v1140 = vpop.f32.mrf.mxu0
    %1141 = vdwg.mxu0
    %1142 = vst [vmem:[%s3] sm:$0x3] %v1137
    // Predicated region
    $region18: #{net_forward.1} parent=1 // pred_check
      _
    $region19: #{net_forward.1} parent=1 // pred_check_branch
      %1144 = sbr.rel (0) target = $region21
    $region20: #{net_forward.1} parent=1 // pred_region
      _
    $region21: #{net_forward.1} parent=1 // pred_fallthru
      _
    // Predicated region
    $region22: #{net_forward.1} parent=1 // pred_check
      _
    $region23: #{net_forward.1} parent=1 // pred_check_branch
      %1146 = sbr.rel (0) target = $region25
    $region24: #{net_forward.1} parent=1 // pred_region
      _
    $region25: #{net_forward.1} parent=1 // pred_fallthru
      _
    %1147 = vsyncpa [#allocation3], 1

</llo_original>
